<compile_context>
chip_gen: v5e
topology: v5e:2x2
jax: 0.10.0
libtpu: 0.0.40
codegen_flags: <defaults>
</compile_context>

<pallas_src>
import jax
import jax.numpy as jnp
from jax.experimental import pallas as pl
from jax.experimental.pallas import tpu as pltpu

INPUT_SIZE = 50
HIDDEN_SIZE = 20
NUM_CLASSES = 204

# Lane-aligned (padded) feature sizes.
IN_PAD = 128
HID_PAD = 128
OUT_PAD = 256


def _round_up(n, m):
    return (n + m - 1) // m * m


def mlp_kernel(x_ref, w1_ref, b1_ref, w2_ref, b2_ref, o_ref):
    # fc1 on the MXU: bf16 x bf16 -> f32 accumulation.
    h = jnp.dot(x_ref[...], w1_ref[...], preferred_element_type=jnp.float32)
    # Bias add + ReLU in f32 on the VPU (v5e has no bf16 VALU).
    h = jnp.maximum(h + b1_ref[...], 0.0)
    # fc2: cast activations to bf16 only as MXU input; accumulate in f32.
    out = jnp.dot(h.astype(w2_ref.dtype), w2_ref[...],
                  preferred_element_type=jnp.float32)
    o_ref[...] = (out + b2_ref[...]).astype(o_ref.dtype)


def neural_net_forward(x, w1, b1, w2, b2, *, tile_b=512):
    """x: [B, INPUT_SIZE] float. Returns [B, NUM_CLASSES] f32.

    Expects padded params from init_params:
      w1: [IN_PAD, HID_PAD] bf16, b1: [1, HID_PAD] f32,
      w2: [HID_PAD, OUT_PAD] bf16, b2: [1, OUT_PAD] f32.
    """
    B = x.shape[0]
    # Batch tile: large enough to amortize ~0.35us/step overhead, tiny vs VMEM
    # (double-buffered x 512x128 bf16 + out 512x256 f32 ~ 1.3 MiB, fits v7x too).
    tile_b = min(tile_b, max(8, _round_up(B, 8)))
    b_pad = _round_up(B, tile_b)

    # Zero-pad batch + feature dims and cast activations to bf16 (halves the
    # dominant HBM stream; kernel accumulates in f32).
    x_p = jnp.zeros((b_pad, IN_PAD), jnp.bfloat16)
    x_p = x_p.at[:B, :INPUT_SIZE].set(x.astype(jnp.bfloat16))

    grid = (b_pad // tile_b,)
    flops = 2 * b_pad * (IN_PAD * HID_PAD + HID_PAD * OUT_PAD)
    bytes_accessed = int(x_p.size * 2 + w1.size * 2 + w2.size * 2
                         + b1.size * 4 + b2.size * 4 + b_pad * OUT_PAD * 4)

    out_padded = pl.pallas_call(
        mlp_kernel,
        out_shape=jax.ShapeDtypeStruct((b_pad, OUT_PAD), jnp.float32),
        grid=grid,
        in_specs=[
            pl.BlockSpec((tile_b, IN_PAD), lambda i: (i, 0)),    # x: streamed
            pl.BlockSpec((IN_PAD, HID_PAD), lambda i: (0, 0)),   # w1: resident
            pl.BlockSpec((1, HID_PAD), lambda i: (0, 0)),        # b1: resident
            pl.BlockSpec((HID_PAD, OUT_PAD), lambda i: (0, 0)),  # w2: resident
            pl.BlockSpec((1, OUT_PAD), lambda i: (0, 0)),        # b2: resident
        ],
        out_specs=pl.BlockSpec((tile_b, OUT_PAD), lambda i: (i, 0)),
        compiler_params=pltpu.CompilerParams(
            dimension_semantics=("parallel",)),
        cost_estimate=pl.CostEstimate(
            flops=flops, transcendentals=0, bytes_accessed=bytes_accessed),
    )(x_p, w1, b1, w2, b2)

    # Slice padded batch rows / padded class columns back off.
    return out_padded[:B, :NUM_CLASSES]


def init_params(key):
    """Mimics nn.Linear init (U(-1/sqrt(fan_in), 1/sqrt(fan_in))), then pads
    once to lane-aligned shapes. Weights stored [in_features, out_features]
    (transposed vs. PyTorch) and cast to bf16; biases stay f32, padded with 0."""
    k1, k2, k3, k4 = jax.random.split(key, 4)
    bound1 = 1.0 / float(INPUT_SIZE) ** 0.5
    bound2 = 1.0 / float(HIDDEN_SIZE) ** 0.5
    w1 = jax.random.uniform(k1, (INPUT_SIZE, HIDDEN_SIZE), jnp.float32,
                            -bound1, bound1)
    b1 = jax.random.uniform(k2, (HIDDEN_SIZE,), jnp.float32, -bound1, bound1)
    w2 = jax.random.uniform(k3, (HIDDEN_SIZE, NUM_CLASSES), jnp.float32,
                            -bound2, bound2)
    b2 = jax.random.uniform(k4, (NUM_CLASSES,), jnp.float32, -bound2, bound2)

    w1_p = jnp.zeros((IN_PAD, HID_PAD), jnp.bfloat16)
    w1_p = w1_p.at[:INPUT_SIZE, :HIDDEN_SIZE].set(w1.astype(jnp.bfloat16))
    b1_p = jnp.zeros((1, HID_PAD), jnp.float32).at[0, :HIDDEN_SIZE].set(b1)
    w2_p = jnp.zeros((HID_PAD, OUT_PAD), jnp.bfloat16)
    w2_p = w2_p.at[:HIDDEN_SIZE, :NUM_CLASSES].set(w2.astype(jnp.bfloat16))
    b2_p = jnp.zeros((1, OUT_PAD), jnp.float32).at[0, :NUM_CLASSES].set(b2)
    return w1_p, b1_p, w2_p, b2_p


def _reference(x, w1_p, b1_p, w2_p, b2_p):
    """Pure-JAX reference mirroring the kernel's bf16-input / f32-accum math."""
    B = x.shape[0]
    x_p = jnp.zeros((B, IN_PAD), jnp.float32)
    x_p = x_p.at[:, :INPUT_SIZE].set(
        x.astype(jnp.bfloat16).astype(jnp.float32))
    h = jnp.maximum(x_p @ w1_p.astype(jnp.float32) + b1_p, 0.0)
    out = (h.astype(jnp.bfloat16).astype(jnp.float32)
           @ w2_p.astype(jnp.float32) + b2_p)
    return out[:, :NUM_CLASSES]


if __name__ == "__main__":
    key = jax.random.PRNGKey(0)
    k_params, k_x1, k_x2 = jax.random.split(key, 3)
    w1, b1, w2, b2 = init_params(k_params)

    # NOTE: at tiny batches like this, a fused XLA MLP would beat any Pallas
    # kernel (launch overhead dominates); the kernel pays off at large B.
    batch = 8
    x = jax.random.normal(k_x1, (batch, INPUT_SIZE), jnp.float32)
    out = jax.block_until_ready(neural_net_forward(x, w1, b1, w2, b2))
    ref = _reference(x, w1, b1, w2, b2)
    assert out.shape == (batch, NUM_CLASSES)
    assert jnp.allclose(out, ref, atol=1e-3, rtol=1e-3)

    # Also exercise the batch-padding path (B not a multiple of 8).
    batch2 = 5
    x2 = jax.random.normal(k_x2, (batch2, INPUT_SIZE), jnp.float32)
    out2 = jax.block_until_ready(neural_net_forward(x2, w1, b1, w2, b2))
    ref2 = _reference(x2, w1, b1, w2, b2)
    assert out2.shape == (batch2, NUM_CLASSES)
    assert jnp.allclose(out2, ref2, atol=1e-3, rtol=1e-3)

    print("KERNEL_OK")
</pallas_src>

<mosaic_0001>
module attributes {stable_mosaic.version = 11 : i64} {
  func.func @mlp_kernel(%arg0: i32, %arg1: memref<8x128xbf16, #tpu.memory_space<vmem>>, %arg2: memref<128x128xbf16, #tpu.memory_space<vmem>>, %arg3: memref<1x128xf32, #tpu.memory_space<vmem>>, %arg4: memref<128x256xbf16, #tpu.memory_space<vmem>>, %arg5: memref<1x256xf32, #tpu.memory_space<vmem>>, %arg6: memref<8x256xf32, #tpu.memory_space<vmem>>) attributes {dimension_semantics = [#tpu.dimension_semantics<parallel>], iteration_bounds = array<i64: 1>, scalar_prefetch = 0 : i64, scratch_operands = 0 : i64, tpu.core_type = #tpu.core_type<tc>, window_params = [{transform_indices = @transform_0, window_bounds = array<i64: 8, 128>}, {pipeline_mode = #tpu.pipeline_mode<synchronous>, transform_indices = @transform_1, window_bounds = array<i64: 128, 128>}, {pipeline_mode = #tpu.pipeline_mode<synchronous>, transform_indices = @transform_2, window_bounds = array<i64: 1, 128>}, {pipeline_mode = #tpu.pipeline_mode<synchronous>, transform_indices = @transform_3, window_bounds = array<i64: 128, 256>}, {pipeline_mode = #tpu.pipeline_mode<synchronous>, transform_indices = @transform_4, window_bounds = array<i64: 1, 256>}, {transform_indices = @transform_5, window_bounds = array<i64: 8, 256>}]} {
    %c0 = arith.constant 0 : index
    %c0_0 = arith.constant 0 : index
    %0 = vector.load %arg1[%c0, %c0_0] : memref<8x128xbf16, #tpu.memory_space<vmem>>, vector<8x128xbf16>
    %c0_1 = arith.constant 0 : index
    %c0_2 = arith.constant 0 : index
    %1 = vector.load %arg2[%c0_1, %c0_2] : memref<128x128xbf16, #tpu.memory_space<vmem>>, vector<128x128xbf16>
    %cst = arith.constant dense<0.000000e+00> : vector<8x128xf32>
    %2 = tpu.matmul %0, %1, %cst {dimension_numbers = #tpu.dot_dimension_numbers<[1], [0], [0], [1], [0, 0, 1, 1], [], []>} : vector<8x128xbf16>, vector<128x128xbf16>, vector<8x128xf32> -> vector<8x128xf32>
    %c0_3 = arith.constant 0 : index
    %c0_4 = arith.constant 0 : index
    %3 = vector.load %arg3[%c0_3, %c0_4] : memref<1x128xf32, #tpu.memory_space<vmem>>, vector<1x128xf32>
    %4 = vector.broadcast %3 : vector<1x128xf32> to vector<8x128xf32>
    %5 = arith.addf %2, %4 : vector<8x128xf32>
    %cst_5 = arith.constant 0.000000e+00 : f32
    %6 = vector.broadcast %cst_5 : f32 to vector<8x128xf32>
    %7 = arith.maximumf %5, %6 : vector<8x128xf32>
    %8 = arith.truncf %7 : vector<8x128xf32> to vector<8x128xbf16>
    %c0_6 = arith.constant 0 : index
    %c0_7 = arith.constant 0 : index
    %9 = vector.load %arg4[%c0_6, %c0_7] : memref<128x256xbf16, #tpu.memory_space<vmem>>, vector<128x256xbf16>
    %cst_8 = arith.constant dense<0.000000e+00> : vector<8x256xf32>
    %10 = tpu.matmul %8, %9, %cst_8 {dimension_numbers = #tpu.dot_dimension_numbers<[1], [0], [0], [1], [0, 0, 1, 1], [], []>} : vector<8x128xbf16>, vector<128x256xbf16>, vector<8x256xf32> -> vector<8x256xf32>
    %c0_9 = arith.constant 0 : index
    %c0_10 = arith.constant 0 : index
    %11 = vector.load %arg5[%c0_9, %c0_10] : memref<1x256xf32, #tpu.memory_space<vmem>>, vector<1x256xf32>
    %12 = vector.broadcast %11 : vector<1x256xf32> to vector<8x256xf32>
    %13 = arith.addf %10, %12 : vector<8x256xf32>
    %c0_11 = arith.constant 0 : index
    %c0_12 = arith.constant 0 : index
    %14 = vector.load %arg6[%c0_11, %c0_12] : memref<8x256xf32, #tpu.memory_space<vmem>>, vector<8x256xf32>
    tpu.vector_store %arg6[%c0_11, %c0_12], %13 {strides = array<i32>} : memref<8x256xf32, #tpu.memory_space<vmem>>, vector<8x256xf32>,
    return
  }
  func.func @transform_0(%arg0: i32) -> (i32, i32) {
    %c0_i32 = arith.constant 0 : i32
    %c0_i32_0 = arith.constant 0 : i32
    return %arg0, %c0_i32 : i32, i32
  }
  func.func @transform_1(%arg0: i32) -> (i32, i32) {
    %c0_i32 = arith.constant 0 : i32
    %c0_i32_0 = arith.constant 0 : i32
    %c0_i32_1 = arith.constant 0 : i32
    return %c0_i32, %c0_i32_0 : i32, i32
  }
  func.func @transform_2(%arg0: i32) -> (i32, i32) {
    %c0_i32 = arith.constant 0 : i32
    %c0_i32_0 = arith.constant 0 : i32
    %c0_i32_1 = arith.constant 0 : i32
    return %c0_i32, %c0_i32_0 : i32, i32
  }
  func.func @transform_3(%arg0: i32) -> (i32, i32) {
    %c0_i32 = arith.constant 0 : i32
    %c0_i32_0 = arith.constant 0 : i32
    %c0_i32_1 = arith.constant 0 : i32
    return %c0_i32, %c0_i32_0 : i32, i32
  }
  func.func @transform_4(%arg0: i32) -> (i32, i32) {
    %c0_i32 = arith.constant 0 : i32
    %c0_i32_0 = arith.constant 0 : i32
    %c0_i32_1 = arith.constant 0 : i32
    return %c0_i32, %c0_i32_0 : i32, i32
  }
  func.func @transform_5(%arg0: i32) -> (i32, i32) {
    %c0_i32 = arith.constant 0 : i32
    %c0_i32_0 = arith.constant 0 : i32
    return %arg0, %c0_i32 : i32, i32
  }
}

</mosaic_0001>

<llo_original>
// kernel: tpu_custom_call.1
$region0: #{tpu_custom_call.1}
  #allocation0 [shape = 'u32[]', space=smem, size = 0x4, offset = 0x4, fixed_abs, tag = 'smem constant byte address 0x4 - core index']
  #allocation1 [shape = 'u32[72,128]{1,0:T(1,128)}', space=vmem, size = 0x9000, scoped, tag = 'internal scratch']
  %s0 = inlined_call_operand.hbm [shape: bf16[8,128], index: 0, kind: input, shape index: {}]
  %s1 = inlined_call_operand.hbm [shape: bf16[128,128], index: 1, kind: input, shape index: {}]
  %s2 = inlined_call_operand.vmem [shape: f32[1,128], index: 2, kind: input, shape index: {}]
  %s3 = inlined_call_operand.hbm [shape: bf16[128,256], index: 3, kind: input, shape index: {}]
  %s4 = inlined_call_operand.vmem [shape: f32[1,256], index: 4, kind: input, shape index: {}]
  %s5 = inlined_call_operand.hbm [shape: f32[8,256], index: 5, kind: output, shape index: {}]
  %s6 = sld [smem:[#allocation0]]
  $region42: #{tpu_custom_call.1} parent=0
    _
  %s8 = ssub.s32 1, %s6
  %s9 = scalar_select 0, %s8, %s6
  $region1: #{tpu_custom_call.1} parent=0
    #allocation2 [shape = 'u8[2048]{0}', space=vmem, size = 0x800, scoped, tag = 'input window, operand 0, single buffered']
    #allocation3 [shape = 's32[1]{0}', space=sflag, size = 0x4, scoped, tag = 'scoped memory for tpu_custom_call.1']
    #allocation4 [shape = 's32[1]{0}', space=sflag, size = 0x4, scoped, tag = 'scoped memory for tpu_custom_call.1']
    #allocation5 [shape = 'u8[32768]{0}', space=vmem, size = 0x8000, scoped, tag = 'input window, operand 1, single buffered']
    #allocation6 [shape = 's32[1]{0}', space=sflag, size = 0x4, scoped, tag = 'scoped memory for tpu_custom_call.1']
    #allocation7 [shape = 'u8[65536]{0}', space=vmem, size = 0x10000, scoped, tag = 'input window, operand 3, single buffered']
    #allocation8 [shape = 'u8[8192]{0}', space=vmem, size = 0x2000, scoped, tag = 'output window, operand 0, single buffered']
    %10 = vsyncpa [#allocation3], 0
    %11 = vsyncpa [#allocation6], 0
    %12 = vsyncpa [#allocation4], 0
    // Predicated region
    $region2: #{tpu_custom_call.1} parent=1 // pred_check
      _
    $region3: #{tpu_custom_call.1} parent=1 // pred_check_branch
      %14 = sbr.rel (0) target = $region5
    $region4: #{tpu_custom_call.1} parent=1 // pred_region
      %16 = vsyncadd [#allocation3], 0
      %s18 = sshll.u32 %s0, 4
      %s19 = int_to_ptr.hbm [resolvable:$true] %s18
      %s20 = sshll.u32 [#allocation2], 4
      %s21 = int_to_ptr.vmem [resolvable:$true] %s20
      %23 = dma.hbm_to_vmem [thread:$0]  %s19, 64, %s21, [#allocation3]
    $region5: #{tpu_custom_call.1} parent=1 // pred_fallthru
      _
    // Predicated region
    $region6: #{tpu_custom_call.1} parent=1 // pred_check
      _
    $region7: #{tpu_custom_call.1} parent=1 // pred_check_branch
      %25 = sbr.rel (0) target = $region9
    $region8: #{tpu_custom_call.1} parent=1 // pred_region
      %27 = vsyncadd [#allocation6], 0
      %s28 = sshll.u32 %s1, 4
      %s29 = int_to_ptr.hbm [resolvable:$true] %s28
      %s30 = sshll.u32 [#allocation5], 4
      %s31 = int_to_ptr.vmem [resolvable:$true] %s30
      %36 = dma.hbm_to_vmem [thread:$0]  %s29, 1024, %s31, [#allocation6], 64, 64, 4
    $region9: #{tpu_custom_call.1} parent=1 // pred_fallthru
      _
    // Predicated region
    $region10: #{tpu_custom_call.1} parent=1 // pred_check
      _
    $region11: #{tpu_custom_call.1} parent=1 // pred_check_branch
      %38 = sbr.rel (0) target = $region13
    $region12: #{tpu_custom_call.1} parent=1 // pred_region
      _
    $region13: #{tpu_custom_call.1} parent=1 // pred_fallthru
      _
    // Predicated region
    $region14: #{tpu_custom_call.1} parent=1 // pred_check
      _
    $region15: #{tpu_custom_call.1} parent=1 // pred_check_branch
      %40 = sbr.rel (0) target = $region17
    $region16: #{tpu_custom_call.1} parent=1 // pred_region
      %42 = vsyncadd [#allocation6], 0
      %s43 = sshll.u32 %s3, 4
      %s44 = int_to_ptr.hbm [resolvable:$true] %s43
      %s45 = sshll.u32 [#allocation7], 4
      %s46 = int_to_ptr.vmem [resolvable:$true] %s45
      %51 = dma.hbm_to_vmem [thread:$0]  %s44, 2048, %s46, [#allocation6], 128, 128, 8
    $region17: #{tpu_custom_call.1} parent=1 // pred_fallthru
      _
    // Predicated region
    $region18: #{tpu_custom_call.1} parent=1 // pred_check
      _
    $region19: #{tpu_custom_call.1} parent=1 // pred_check_branch
      %53 = sbr.rel (0) target = $region21
    $region20: #{tpu_custom_call.1} parent=1 // pred_region
      _
    $region21: #{tpu_custom_call.1} parent=1 // pred_fallthru
      _
    // Predicated region
    $region22: #{tpu_custom_call.1} parent=1 // pred_check
      _
    $region23: #{tpu_custom_call.1} parent=1 // pred_check_branch
      %55 = sbr.rel (0) target = $region25
    $region24: #{tpu_custom_call.1} parent=1 // pred_region
      %57 = dma.done [#allocation3], 64
    $region25: #{tpu_custom_call.1} parent=1 // pred_fallthru
      _
    // Predicated region
    $region26: #{tpu_custom_call.1} parent=1 // pred_check
      _
    $region27: #{tpu_custom_call.1} parent=1 // pred_check_branch
      %59 = sbr.rel (0) target = $region29
    $region28: #{tpu_custom_call.1} parent=1 // pred_region
      %61 = dma.done [#allocation6], 1024
    $region29: #{tpu_custom_call.1} parent=1 // pred_fallthru
      _
    // Predicated region
    $region30: #{tpu_custom_call.1} parent=1 // pred_check
      _
    $region31: #{tpu_custom_call.1} parent=1 // pred_check_branch
      %63 = sbr.rel (0) target = $region33
    $region32: #{tpu_custom_call.1} parent=1 // pred_region
      %65 = dma.done [#allocation6], 2048
    $region33: #{tpu_custom_call.1} parent=1 // pred_fallthru
      _
    %v66 = vld [vmem:[#allocation2] sm:$0xf]
    %v67 = vld [vmem:[#allocation5] sm:$0xf]
    %v68 = vld [vmem:[#allocation5 + $0x4] sm:$0xf]
    %v69 = vld [vmem:[#allocation5 + $0x8] sm:$0xf]
    %v70 = vld [vmem:[#allocation5 + $0xc] sm:$0xf]
    %v71 = vld [vmem:[#allocation5 + $0x10] sm:$0xf]
    %v72 = vld [vmem:[#allocation5 + $0x14] sm:$0xf]
    %v73 = vld [vmem:[#allocation5 + $0x18] sm:$0xf]
    %v74 = vld [vmem:[#allocation5 + $0x1c] sm:$0xf]
    %v75 = vld [vmem:[#allocation5 + $0x20] sm:$0xf]
    %v76 = vld [vmem:[#allocation5 + $0x24] sm:$0xf]
    %v77 = vld [vmem:[#allocation5 + $0x28] sm:$0xf]
    %v78 = vld [vmem:[#allocation5 + $0x2c] sm:$0xf]
    %v79 = vld [vmem:[#allocation5 + $0x30] sm:$0xf]
    %v80 = vld [vmem:[#allocation5 + $0x34] sm:$0xf]
    %v81 = vld [vmem:[#allocation5 + $0x38] sm:$0xf]
    %v82 = vld [vmem:[#allocation5 + $0x3c] sm:$0xf]
    %v83 = vld [vmem:[%s2] sm:$0x1]
    %v85 = vperm.slane %v83, 0
    %v103 = vunpack.c.l.b16 %v67
    %v104 = vunpack.c.l.b16 %v68
    %v105 = vunpack.c.l.b16 %v69
    %v106 = vunpack.c.l.b16 %v70
    %v107 = vunpack.c.l.b16 %v71
    %v108 = vunpack.c.l.b16 %v72
    %v109 = vunpack.c.l.b16 %v73
    %v110 = vunpack.c.l.b16 %v74
    %v111 = vunpack.c.l.b16 %v75
    %v112 = vunpack.c.l.b16 %v76
    %v113 = vunpack.c.l.b16 %v77
    %v114 = vunpack.c.l.b16 %v78
    %v115 = vunpack.c.l.b16 %v79
    %v116 = vunpack.c.l.b16 %v80
    %v117 = vunpack.c.l.b16 %v81
    %v118 = vunpack.c.l.b16 %v82
    %v119 = vpack.c.b16 %v104, %v103
    %v120 = vpack.c.b16 %v106, %v105
    %v121 = vpack.c.b16 %v108, %v107
    %v122 = vpack.c.b16 %v110, %v109
    %v123 = vpack.c.b16 %v112, %v111
    %v124 = vpack.c.b16 %v114, %v113
    %v125 = vpack.c.b16 %v116, %v115
    %v126 = vpack.c.b16 %v118, %v117
    %135 = vmatpush.bf16.msra.mxu0 %v126
    %136 = vmatpush.bf16.msra.mxu0 %v125
    %137 = vmatpush.bf16.msra.mxu0 %v124
    %138 = vmatpush.bf16.msra.mxu0 %v123
    %139 = vmatpush.bf16.msra.mxu0 %v122
    %140 = vmatpush.bf16.msra.mxu0 %v121
    %141 = vmatpush.bf16.msra.mxu0 %v120
    %142 = vmatpush.bf16.msra.mxu0 %v119
    %143 = vmatmul.bf16.gmra.mxu0 %v66
    %v144 = vpop.f32.mrf.mxu0
    %v145 = vadd.f32 %v85, %v144
    %v146 = vpop.f32.mrf.mxu0
    %147 = vdwg.mxu0
    %v148 = vmax.f32 %v145, 0.0
    %v149 = vpack.c.bf16 %v148, %v148
    %v150 = vld [vmem:[#allocation7] sm:$0xff]
    %v151 = vld [vmem:[#allocation7 + $0x8] sm:$0xff]
    %v152 = vld [vmem:[#allocation7 + $0x10] sm:$0xff]
    %v153 = vld [vmem:[#allocation7 + $0x18] sm:$0xff]
    %v154 = vld [vmem:[#allocation7 + $0x20] sm:$0xff]
    %v155 = vld [vmem:[#allocation7 + $0x28] sm:$0xff]
    %v156 = vld [vmem:[#allocation7 + $0x30] sm:$0xff]
    %v157 = vld [vmem:[#allocation7 + $0x38] sm:$0xff]
    %v158 = vld [vmem:[#allocation7 + $0x40] sm:$0xff]
    %v159 = vld [vmem:[#allocation7 + $0x48] sm:$0xff]
    %v160 = vld [vmem:[#allocation7 + $0x50] sm:$0xff]
    %v161 = vld [vmem:[#allocation7 + $0x58] sm:$0xff]
    %v162 = vld [vmem:[#allocation7 + $0x60] sm:$0xff]
    %v163 = vld [vmem:[#allocation7 + $0x68] sm:$0xff]
    %v164 = vld [vmem:[#allocation7 + $0x70] sm:$0xff]
    %v165 = vld [vmem:[#allocation7 + $0x78] sm:$0xff]
    %v166 = vld [vmem:[%s4] sm:$0x3]
    %v168 = vperm.slane %v166, 0
    %v169 = vperm.slane %v166, 1
    %v188 = vunpack.c.l.b16 %v150
    %v189 = vunpack.c.h.b16 %v150
    %v190 = vunpack.c.l.b16 %v151
    %v191 = vunpack.c.h.b16 %v151
    %v192 = vunpack.c.l.b16 %v152
    %v193 = vunpack.c.h.b16 %v152
    %v194 = vunpack.c.l.b16 %v153
    %v195 = vunpack.c.h.b16 %v153
    %v196 = vunpack.c.l.b16 %v154
    %v197 = vunpack.c.h.b16 %v154
    %v198 = vunpack.c.l.b16 %v155
    %v199 = vunpack.c.h.b16 %v155
    %v200 = vunpack.c.l.b16 %v156
    %v201 = vunpack.c.h.b16 %v156
    %v202 = vunpack.c.l.b16 %v157
    %v203 = vunpack.c.h.b16 %v157
    %v204 = vunpack.c.l.b16 %v158
    %v205 = vunpack.c.h.b16 %v158
    %v206 = vunpack.c.l.b16 %v159
    %v207 = vunpack.c.h.b16 %v159
    %v208 = vunpack.c.l.b16 %v160
    %v209 = vunpack.c.h.b16 %v160
    %v210 = vunpack.c.l.b16 %v161
    %v211 = vunpack.c.h.b16 %v161
    %v212 = vunpack.c.l.b16 %v162
    %v213 = vunpack.c.h.b16 %v162
    %v214 = vunpack.c.l.b16 %v163
    %v215 = vunpack.c.h.b16 %v163
    %v216 = vunpack.c.l.b16 %v164
    %v217 = vunpack.c.h.b16 %v164
    %v218 = vunpack.c.l.b16 %v165
    %v219 = vunpack.c.h.b16 %v165
    %v220 = vpack.c.b16 %v190, %v188
    %v221 = vpack.c.b16 %v191, %v189
    %v222 = vpack.c.b16 %v194, %v192
    %v223 = vpack.c.b16 %v195, %v193
    %v224 = vpack.c.b16 %v198, %v196
    %v225 = vpack.c.b16 %v199, %v197
    %v226 = vpack.c.b16 %v202, %v200
    %v227 = vpack.c.b16 %v203, %v201
    %v228 = vpack.c.b16 %v206, %v204
    %v229 = vpack.c.b16 %v207, %v205
    %v230 = vpack.c.b16 %v210, %v208
    %v231 = vpack.c.b16 %v211, %v209
    %v232 = vpack.c.b16 %v214, %v212
    %v233 = vpack.c.b16 %v215, %v213
    %v234 = vpack.c.b16 %v218, %v216
    %v235 = vpack.c.b16 %v219, %v217
    %252 = vmatpush.bf16.msra.mxu0 %v234
    %253 = vmatpush.bf16.msra.mxu0 %v232
    %254 = vmatpush.bf16.msra.mxu0 %v230
    %255 = vmatpush.bf16.msra.mxu0 %v228
    %256 = vmatpush.bf16.msra.mxu0 %v226
    %257 = vmatpush.bf16.msra.mxu0 %v224
    %258 = vmatpush.bf16.msra.mxu0 %v222
    %259 = vmatpush.bf16.msra.mxu0 %v220
    %260 = vmatmul.bf16.gmra.mxu0 %v149
    %v261 = vpop.f32.mrf.mxu0
    %v262 = vadd.f32 %v168, %v261
    %v263 = vpop.f32.mrf.mxu0
    %264 = vdwg.mxu0
    %265 = vmatpush.bf16.msra.mxu0 %v235
    %266 = vmatpush.bf16.msra.mxu0 %v233
    %267 = vmatpush.bf16.msra.mxu0 %v231
    %268 = vmatpush.bf16.msra.mxu0 %v229
    %269 = vmatpush.bf16.msra.mxu0 %v227
    %270 = vmatpush.bf16.msra.mxu0 %v225
    %271 = vmatpush.bf16.msra.mxu0 %v223
    %272 = vmatpush.bf16.msra.mxu0 %v221
    %273 = vmatmul.bf16.gmra.mxu0 %v149
    %v274 = vpop.f32.mrf.mxu0
    %v275 = vadd.f32 %v169, %v274
    %v276 = vpop.f32.mrf.mxu0
    %277 = vdwg.mxu0
    %278 = vst [vmem:[#allocation8] sm:$0xff] %v262
    %279 = vst [vmem:[#allocation8 + $0x8] sm:$0xff] %v275
    // Predicated region
    $region34: #{tpu_custom_call.1} parent=1 // pred_check
      _
    $region35: #{tpu_custom_call.1} parent=1 // pred_check_branch
      %281 = sbr.rel (0) target = $region37
    $region36: #{tpu_custom_call.1} parent=1 // pred_region
      %283 = vsyncadd [#allocation4], 0
      %s285 = sshll.u32 [#allocation8], 4
      %s286 = int_to_ptr.vmem [resolvable:$true] %s285
      %s287 = sshll.u32 %s5, 4
      %s288 = int_to_ptr.hbm [resolvable:$true] %s287
      %290 = dma.vmem_to_hbm [thread:$0]  %s286, 256, %s288, [#allocation4]
    $region37: #{tpu_custom_call.1} parent=1 // pred_fallthru
      _
    // Predicated region
    $region38: #{tpu_custom_call.1} parent=1 // pred_check
      _
    $region39: #{tpu_custom_call.1} parent=1 // pred_check_branch
      %292 = sbr.rel (0) target = $region41
    $region40: #{tpu_custom_call.1} parent=1 // pred_region
      %294 = dma.done [#allocation4], 256
    $region41: #{tpu_custom_call.1} parent=1 // pred_fallthru
      _
    %295 = vsyncpa [#allocation3], 1
    %296 = vsyncpa [#allocation6], 1
    %297 = vsyncpa [#allocation4], 1

</llo_original>
